<compile_context>
chip_gen: v5e
topology: v5e:2x2
jax: 0.10.0
libtpu: 0.0.40
codegen_flags: <defaults>
</compile_context>

<pallas_src>
import math

import jax
import jax.numpy as jnp
from jax.experimental import pallas as pl
from jax.experimental.pallas import tpu as pltpu


# ----------------------------- config ---------------------------------------
class Config:
    dim = 32
    hidden_dim = None          # derived below, as in FeedForward.__init__
    multiple_of = 16
    n_experts = 4
    per_token_num_experts = 2
    n_share_experts = 1
    score_func = "softmax"
    norm_topk_prob = True
    aux_loss_alpha = 0.0
    seq_aux = False
    dropout = 0.0
    norm_eps = 1e-5


def derive_hidden_dim(cfg):
    if cfg.hidden_dim is None:
        hidden_dim = 4 * cfg.dim
        hidden_dim = int(2 * hidden_dim / 3)
        cfg.hidden_dim = cfg.multiple_of * (
            (hidden_dim + cfg.multiple_of - 1) // cfg.multiple_of
        )
    return cfg.hidden_dim


def round_up(a, b):
    return (a + b - 1) // b * b


# ----------------------------- Pallas expert kernel --------------------------
def moe_experts(x_pad, rw_pad, flags, w13, w2, *, t_tile):
    """x_pad: (T_pad, D_pad) bf16; rw_pad: (T_pad, E_pad) f32;
    flags: (n_tiles*E_total,) int32 scalar-prefetch; w13: (E_total, D_pad, 2*H_pad)
    bf16; w2: (E_total, H_pad, D_pad) bf16.  Returns (T_pad, D_pad) f32."""
    T_pad, D_pad = x_pad.shape
    E_total, _, H2 = w13.shape
    H_pad = H2 // 2
    E_pad = rw_pad.shape[1]
    n_tiles = T_pad // t_tile

    def kernel(flags_ref, x_ref, rw_ref, w13_ref, w2_ref, o_ref):
        ti = pl.program_id(0)   # token tile  ("parallel" -> megacore on v7x)
        e = pl.program_id(1)    # expert      (reduction axis, last, "arbitrary")

        @pl.when(e == 0)
        def _init():
            o_ref[...] = jnp.zeros_like(o_ref)

        # Skip experts that receive no token in this tile (weights are still
        # streamed by the BlockSpec pipeline, but all MXU/VPU work is skipped).
        @pl.when(flags_ref[ti * E_total + e] != 0)
        def _compute():
            # One fused (tT, D_pad) @ (D_pad, 2*H_pad) bf16 matmul (f32 acc)
            # covers both W1 and W3.
            h = jnp.dot(x_ref[...], w13_ref[0],
                        preferred_element_type=jnp.float32)       # (tT, 2H_pad)
            h1 = h[:, :H_pad]
            h3 = h[:, H_pad:]
            g = h1 * jax.nn.sigmoid(h1) * h3                      # SwiGLU in f32
            out = jnp.dot(g.astype(w2_ref.dtype), w2_ref[0],
                          preferred_element_type=jnp.float32)     # (tT, D_pad)
            # Routing weight of expert e: select lane e of the resident
            # (tT, E_pad) routing tile (replaces a 1-lane-wide DMA per expert).
            lane = jax.lax.broadcasted_iota(jnp.int32, rw_ref.shape, 1)
            rw_col = jnp.sum(jnp.where(lane == e, rw_ref[...], 0.0),
                             axis=-1, keepdims=True)              # (tT, 1) f32
            o_ref[...] += rw_col * out

    # TODO(synk): at realistic D/H, tile H (and the W2 K-reduce) so the
    # double-buffered weight tiles fit v7x's 64 MiB VMEM; consider fp8 expert
    # weights on v7x and pl.Buffered(3) weight pipelining on v6e.
    return pl.pallas_call(
        kernel,
        out_shape=jax.ShapeDtypeStruct((T_pad, D_pad), jnp.float32),
        grid_spec=pltpu.PrefetchScalarGridSpec(
            num_scalar_prefetch=1,
            grid=(n_tiles, E_total),
            in_specs=[
                pl.BlockSpec((t_tile, D_pad), lambda ti, e, fl: (ti, 0)),
                pl.BlockSpec((t_tile, E_pad), lambda ti, e, fl: (ti, 0)),
                pl.BlockSpec((1, D_pad, H2), lambda ti, e, fl: (e, 0, 0)),
                pl.BlockSpec((1, H_pad, D_pad), lambda ti, e, fl: (e, 0, 0)),
            ],
            out_specs=pl.BlockSpec((t_tile, D_pad), lambda ti, e, fl: (ti, 0)),
        ),
        compiler_params=pltpu.CompilerParams(
            dimension_semantics=("parallel", "arbitrary")),
    )(flags, x_pad, rw_pad, w13, w2)


# ----------------------------- wrapper ---------------------------------------
def prepare_expert_weights(params, cfg):
    """Pad to lane-dense shapes, fuse W1|W3, cast to bf16 (done once)."""
    D, H = cfg.dim, cfg.hidden_dim
    E_total = cfg.n_experts + cfg.n_share_experts
    D_pad = round_up(D, 128)
    H_pad = round_up(H, 128)
    W13 = jnp.zeros((E_total, D_pad, 2 * H_pad), jnp.float32)
    W13 = W13.at[:, :D, :H].set(params["W1s"])
    W13 = W13.at[:, :D, H_pad:H_pad + H].set(params["W3s"])
    W2p = jnp.zeros((E_total, H_pad, D_pad), jnp.float32)
    W2p = W2p.at[:, :H, :D].set(params["W2s"])
    return W13.astype(jnp.bfloat16), W2p.astype(jnp.bfloat16)


def moe_feed_forward(x, gate_w, W13, W2p, cfg):
    """x: (B, S, D) f32 -> (B, S, D) f32."""
    B, S, D = x.shape
    T = B * S
    x_tok = x.reshape(T, D).astype(jnp.float32)

    # --- gate: tiny (T,D)@(D,E) matmul + softmax + top-k in plain XLA glue ---
    scores = jax.nn.softmax(x_tok @ gate_w.T, axis=-1)            # (T, E)
    k = cfg.per_token_num_experts
    topk_w, topk_idx = jax.lax.top_k(scores, k)                   # (T, k)
    if k > 1 and cfg.norm_topk_prob:
        topk_w = topk_w / (jnp.sum(topk_w, axis=-1, keepdims=True) + 1e-20)

    E = cfg.n_experts
    E_total = E + cfg.n_share_experts
    rw = jnp.zeros((T, E), jnp.float32).at[
        jnp.arange(T)[:, None], topk_idx].set(topk_w)
    if cfg.n_share_experts > 0:
        rw = jnp.concatenate(
            [rw, jnp.ones((T, cfg.n_share_experts), jnp.float32)], axis=1)

    # --- lane-dense padding + token tiling ---
    D_pad = W13.shape[1]
    E_pad = round_up(E_total, 128)
    t_tile = 256 if T >= 256 else round_up(T, 16)
    T_pad = round_up(T, t_tile)
    n_tiles = T_pad // t_tile

    x_pad = (jnp.zeros((T_pad, D_pad), jnp.float32)
             .at[:T, :D].set(x_tok).astype(jnp.bfloat16))
    rw_pad = jnp.zeros((T_pad, E_pad), jnp.float32).at[:T, :E_total].set(rw)

    # per-(token-tile, expert) "any token routed here" flags (scalar prefetch)
    routed = jnp.zeros((T_pad, E_total), jnp.bool_).at[:T].set(rw != 0.0)
    flags = (routed.reshape(n_tiles, t_tile, E_total)
             .any(axis=1).astype(jnp.int32).reshape(-1))

    y_pad = moe_experts(x_pad, rw_pad, flags, W13, W2p, t_tile=t_tile)
    # dropout: eval mode -> identity
    return y_pad[:T, :D].reshape(B, S, D)


# ----------------------------- params / reference ----------------------------
def init_params(key, cfg):
    D, H = cfg.dim, cfg.hidden_dim
    E_total = cfg.n_experts + cfg.n_share_experts

    def linear(key, out_f, in_f):
        # kaiming_uniform(a=sqrt(5)) on (out, in) == U(-1/sqrt(in), 1/sqrt(in))
        bound = 1.0 / math.sqrt(in_f)
        return jax.random.uniform(key, (out_f, in_f), jnp.float32, -bound, bound)

    keys = jax.random.split(key, 3 * E_total + 1)
    W1s, W2s, W3s = [], [], []
    for e in range(E_total):
        w1 = linear(keys[3 * e + 0], H, D)   # (H, D) torch layout
        w2 = linear(keys[3 * e + 1], D, H)   # (D, H)
        w3 = linear(keys[3 * e + 2], H, D)   # (H, D)
        W1s.append(w1.T)                     # (D, H) matmul-ready
        W2s.append(w2.T)                     # (H, D)
        W3s.append(w3.T)                     # (D, H)
    gate_w = linear(keys[-1], cfg.n_experts, D)  # (E, D)
    return {
        "gate_w": gate_w,
        "W1s": jnp.stack(W1s),
        "W2s": jnp.stack(W2s),
        "W3s": jnp.stack(W3s),
    }


def ref_forward(x, params, cfg):
    B, S, D = x.shape
    xt = x.reshape(-1, D)
    scores = jax.nn.softmax(xt @ params["gate_w"].T, axis=-1)
    topk_w, topk_idx = jax.lax.top_k(scores, cfg.per_token_num_experts)
    if cfg.per_token_num_experts > 1 and cfg.norm_topk_prob:
        topk_w = topk_w / (jnp.sum(topk_w, axis=-1, keepdims=True) + 1e-20)
    y = jnp.zeros_like(xt)
    for e in range(cfg.n_experts):
        w_e = jnp.sum(jnp.where(topk_idx == e, topk_w, 0.0), axis=-1)  # (T,)
        h = jax.nn.silu(xt @ params["W1s"][e]) * (xt @ params["W3s"][e])
        y = y + w_e[:, None] * (h @ params["W2s"][e])
    for s in range(cfg.n_share_experts):
        e = cfg.n_experts + s
        h = jax.nn.silu(xt @ params["W1s"][e]) * (xt @ params["W3s"][e])
        y = y + h @ params["W2s"][e]
    return y.reshape(B, S, D)


# ----------------------------- main ------------------------------------------
if __name__ == "__main__":
    cfg = Config()
    derive_hidden_dim(cfg)   # dim=32 -> hidden_dim=96

    key = jax.random.PRNGKey(0)
    kx, kp = jax.random.split(key)
    B, S = 2, 8
    x = jax.random.normal(kx, (B, S, cfg.dim), jnp.float32)
    params = init_params(kp, cfg)
    W13, W2p = prepare_expert_weights(params, cfg)

    fwd = jax.jit(lambda xx: moe_feed_forward(xx, params["gate_w"], W13, W2p, cfg))
    y = jax.block_until_ready(fwd(x))
    y_ref = jax.block_until_ready(ref_forward(x, params, cfg))

    assert y.shape == (B, S, cfg.dim)
    max_err = float(jnp.max(jnp.abs(y - y_ref)))
    # bf16 weights/activations with f32 accumulation vs f32 reference
    assert jnp.allclose(y, y_ref, atol=2e-2, rtol=2e-2), max_err
    print("KERNEL_OK")
</pallas_src>

<mosaic_0001>
module attributes {stable_mosaic.version = 11 : i64} {
  func.func @kernel(%arg0: i32, %arg1: i32, %arg2: memref<5xi32, #tpu.memory_space<smem>>, %arg3: memref<16x128xbf16, #tpu.memory_space<vmem>>, %arg4: memref<16x128xf32, #tpu.memory_space<vmem>>, %arg5: memref<1x128x256xbf16, #tpu.memory_space<vmem>>, %arg6: memref<1x128x128xbf16, #tpu.memory_space<vmem>>, %arg7: memref<16x128xf32, #tpu.memory_space<vmem>>) attributes {dimension_semantics = [#tpu.dimension_semantics<parallel>, #tpu.dimension_semantics<arbitrary>], iteration_bounds = array<i64: 1, 5>, scalar_prefetch = 1 : i64, scratch_operands = 0 : i64, tpu.core_type = #tpu.core_type<tc>, window_params = [{transform_indices = @transform_0, window_bounds = array<i64: 16, 128>}, {transform_indices = @transform_1, window_bounds = array<i64: 16, 128>}, {transform_indices = @transform_2, window_bounds = array<i64: 1, 128, 256>}, {transform_indices = @transform_3, window_bounds = array<i64: 1, 128, 128>}, {transform_indices = @transform_4, window_bounds = array<i64: 16, 128>}]} {
    %c0_i32 = arith.constant 0 : i32
    %0 = arith.cmpi eq, %arg1, %c0_i32 : i32
    %1 = arith.extui %0 : i1 to i32
    %c0_i32_0 = arith.constant 0 : i32
    %2 = arith.cmpi ne, %1, %c0_i32_0 : i32
    scf.if %2 {
      %cst = arith.constant 0.000000e+00 : f32
      %10 = vector.broadcast %cst : f32 to vector<16x128xf32>
      %c0 = arith.constant 0 : index
      %c0_3 = arith.constant 0 : index
      %11 = vector.load %arg7[%c0, %c0_3] : memref<16x128xf32, #tpu.memory_space<vmem>>, vector<16x128xf32>
      tpu.vector_store %arg7[%c0, %c0_3], %10 {strides = array<i32>} : memref<16x128xf32, #tpu.memory_space<vmem>>, vector<16x128xf32>,
    } else {
    }
    %c5_i32 = arith.constant 5 : i32
    %3 = arith.muli %arg0, %c5_i32 : i32
    %4 = arith.addi %3, %arg1 : i32
    %5 = arith.index_cast %4 : i32 to index
    %6 = memref.load %arg2[%5] : memref<5xi32, #tpu.memory_space<smem>>
    %c0_i32_1 = arith.constant 0 : i32
    %7 = arith.cmpi ne, %6, %c0_i32_1 : i32
    %8 = arith.extui %7 : i1 to i32
    %c0_i32_2 = arith.constant 0 : i32
    %9 = arith.cmpi ne, %8, %c0_i32_2 : i32
    scf.if %9 {
      %c0 = arith.constant 0 : index
      %c0_3 = arith.constant 0 : index
      %10 = vector.load %arg3[%c0, %c0_3] : memref<16x128xbf16, #tpu.memory_space<vmem>>, vector<16x128xbf16>
      %c0_4 = arith.constant 0 : index
      %c0_5 = arith.constant 0 : index
      %c0_6 = arith.constant 0 : index
      %11 = vector.load %arg5[%c0_4, %c0_5, %c0_6] : memref<1x128x256xbf16, #tpu.memory_space<vmem>>, vector<1x128x256xbf16>
      %12 = vector.shape_cast %11 : vector<1x128x256xbf16> to vector<128x256xbf16>
      %cst = arith.constant dense<0.000000e+00> : vector<16x256xf32>
      %13 = tpu.matmul %10, %12, %cst {dimension_numbers = #tpu.dot_dimension_numbers<[1], [0], [0], [1], [0, 0, 1, 1], [], []>} : vector<16x128xbf16>, vector<128x256xbf16>, vector<16x256xf32> -> vector<16x256xf32>
      %14 = vector.extract_strided_slice %13 {offsets = [0, 0], sizes = [16, 128], strides = [1, 1]} : vector<16x256xf32> to vector<16x128xf32>
      %15 = vector.extract_strided_slice %13 {offsets = [0, 128], sizes = [16, 128], strides = [1, 1]} : vector<16x256xf32> to vector<16x128xf32>
      %16 = arith.negf %14 : vector<16x128xf32>
      %17 = math.exp %16 : vector<16x128xf32>
      %cst_7 = arith.constant 1.000000e+00 : f32
      %18 = vector.broadcast %cst_7 : f32 to vector<16x128xf32>
      %19 = arith.addf %18, %17 : vector<16x128xf32>
      %20 = arith.divf %18, %19 : vector<16x128xf32>
      %21 = arith.mulf %14, %20 : vector<16x128xf32>
      %22 = arith.mulf %21, %15 : vector<16x128xf32>
      %23 = arith.truncf %22 : vector<16x128xf32> to vector<16x128xbf16>
      %c0_8 = arith.constant 0 : index
      %c0_9 = arith.constant 0 : index
      %c0_10 = arith.constant 0 : index
      %24 = vector.load %arg6[%c0_8, %c0_9, %c0_10] : memref<1x128x128xbf16, #tpu.memory_space<vmem>>, vector<1x128x128xbf16>
      %25 = vector.shape_cast %24 : vector<1x128x128xbf16> to vector<128x128xbf16>
      %cst_11 = arith.constant dense<0.000000e+00> : vector<16x128xf32>
      %26 = tpu.matmul %23, %25, %cst_11 {dimension_numbers = #tpu.dot_dimension_numbers<[1], [0], [0], [1], [0, 0, 1, 1], [], []>} : vector<16x128xbf16>, vector<128x128xbf16>, vector<16x128xf32> -> vector<16x128xf32>
      %27 = tpu.iota {dimensions = array<i32: 1>} : vector<16x128xi32>
      %28 = vector.broadcast %arg1 : i32 to vector<16x128xi32>
      %29 = arith.cmpi eq, %27, %28 : vector<16x128xi32>
      %c0_12 = arith.constant 0 : index
      %c0_13 = arith.constant 0 : index
      %30 = vector.load %arg4[%c0_12, %c0_13] : memref<16x128xf32, #tpu.memory_space<vmem>>, vector<16x128xf32>
      %cst_14 = arith.constant 0.000000e+00 : f32
      %31 = vector.broadcast %cst_14 : f32 to vector<16x128xf32>
      %32 = arith.select %29, %30, %31 : vector<16x128xi1>, vector<16x128xf32>
      %cst_15 = arith.constant dense<0.000000e+00> : vector<16xf32>
      %33 = vector.multi_reduction <add>, %32, %cst_15 [1] : vector<16x128xf32> to vector<16xf32>
      %34 = vector.shape_cast %33 : vector<16xf32> to vector<16x1xf32>
      %c0_16 = arith.constant 0 : index
      %c0_17 = arith.constant 0 : index
      %35 = vector.load %arg7[%c0_16, %c0_17] : memref<16x128xf32, #tpu.memory_space<vmem>>, vector<16x128xf32>
      %36 = vector.broadcast %34 : vector<16x1xf32> to vector<16x128xf32>
      %37 = arith.mulf %36, %26 : vector<16x128xf32>
      %38 = arith.addf %35, %37 : vector<16x128xf32>
      %c0_18 = arith.constant 0 : index
      %c0_19 = arith.constant 0 : index
      %39 = vector.load %arg7[%c0_18, %c0_19] : memref<16x128xf32, #tpu.memory_space<vmem>>, vector<16x128xf32>
      tpu.vector_store %arg7[%c0_18, %c0_19], %38 {strides = array<i32>} : memref<16x128xf32, #tpu.memory_space<vmem>>, vector<16x128xf32>,
    } else {
    }
    return
  }
  func.func @transform_0(%arg0: i32, %arg1: i32, %arg2: memref<5xi32, #tpu.memory_space<smem>>) -> (i32, i32) {
    %c0_i32 = arith.constant 0 : i32
    %c0_i32_0 = arith.constant 0 : i32
    return %arg0, %c0_i32 : i32, i32
  }
  func.func @transform_1(%arg0: i32, %arg1: i32, %arg2: memref<5xi32, #tpu.memory_space<smem>>) -> (i32, i32) {
    %c0_i32 = arith.constant 0 : i32
    %c0_i32_0 = arith.constant 0 : i32
    return %arg0, %c0_i32 : i32, i32
  }
  func.func @transform_2(%arg0: i32, %arg1: i32, %arg2: memref<5xi32, #tpu.memory_space<smem>>) -> (i32, i32, i32) {
    %c0_i32 = arith.constant 0 : i32
    %c0_i32_0 = arith.constant 0 : i32
    %c0_i32_1 = arith.constant 0 : i32
    return %arg1, %c0_i32, %c0_i32_0 : i32, i32, i32
  }
  func.func @transform_3(%arg0: i32, %arg1: i32, %arg2: memref<5xi32, #tpu.memory_space<smem>>) -> (i32, i32, i32) {
    %c0_i32 = arith.constant 0 : i32
    %c0_i32_0 = arith.constant 0 : i32
    %c0_i32_1 = arith.constant 0 : i32
    return %arg1, %c0_i32, %c0_i32_0 : i32, i32, i32
  }
  func.func @transform_4(%arg0: i32, %arg1: i32, %arg2: memref<5xi32, #tpu.memory_space<smem>>) -> (i32, i32) {
    %c0_i32 = arith.constant 0 : i32
    %c0_i32_0 = arith.constant 0 : i32
    return %arg0, %c0_i32 : i32, i32
  }
}

</mosaic_0001>

<llo_original>
// kernel: _lambda_.1
$region0: #{_lambda_.1}
  #allocation0 [shape = 'u32[]', space=smem, size = 0x4, offset = 0x4, fixed_abs, tag = 'smem constant byte address 0x4 - core index']
  #allocation1 [shape = 'u32[72,128]{1,0:T(1,128)}', space=vmem, size = 0x9000, scoped, tag = 'internal scratch']
  #allocation2 [shape = 's32[1]{0}', space=sflag, size = 0x4, scoped, tag = 'scoped memory for _lambda_.1']
  #allocation3 [shape = 'u8[512]{0}', space=smem, size = 0x200, scoped, tag = 'prefetched SMEM operand 0']
  %s0 = inlined_call_operand.vmem [shape: s32[5], index: 0, kind: input, shape index: {}]
  %s1 = inlined_call_operand.vmem [shape: bf16[16,128], index: 1, kind: input, shape index: {}]
  %s2 = inlined_call_operand.vmem [shape: f32[16,128], index: 2, kind: input, shape index: {}]
  %s3 = inlined_call_operand.vmem [shape: bf16[5,128,256], index: 3, kind: input, shape index: {}]
  %s4 = inlined_call_operand.vmem [shape: bf16[5,128,128], index: 4, kind: input, shape index: {}]
  %s5 = inlined_call_operand.vmem [shape: f32[16,128], index: 5, kind: output, shape index: {}]
  %s6 = sld [smem:[#allocation0]]
  $region57: #{_lambda_.1} parent=0
    _
  %s8 = ssub.s32 1, %s6
  %s9 = scalar_select 0, %s8, %s6
  %s11 = sshll.u32 %s0, 4
  %s12 = int_to_ptr.vmem [resolvable:$true] %s11
  %14 = dma.vmem_to_smem %s12, 16, [#allocation3], [#allocation2]
  %16 = dma.done [#allocation2], 16
  %17 = sfence
  loop: start=0, step=1, limit=7
  $region2: #{_lambda_.1} parent=0 // loop_pre_header
    _
  $region3: #{_lambda_.1} parent=0 // loop_header
    %s19 = sphi 0, %s23
    %p20 = scmp.ge.s32.totalorder %s19, 7
    %s26 = sphi 0, %s38
    %s27 = sphi 0, %s34
    %s28 = sphi 0, %s26
    %s29 = sphi 0, %s27
    %s30 = sphi 0, %s28
    %s31 = sphi 0, %s29
    %s41 = sphi 0, %s43
    %s44 = sphi 0, %s41
    %s45 = sphi 0, %s44
    %s61 = sphi 0, %s45
    %s67 = sphi 0, %s69
    %s70 = sphi 0, %s67
    %s71 = sphi 0, %s70
    %s87 = sphi 0, %s71
    %s93 = sphi 0, %s95
    %s96 = sphi 0, %s93
    %s97 = sphi 0, %s96
    %s113 = sphi 0, %s97
    %s119 = sphi 0, %s121
    %s122 = sphi 0, %s119
    %s123 = sphi 0, %s122
    %s139 = sphi 0, %s123
    %s145 = sphi 0, %s147
    %s148 = sphi 0, %s145
    %s149 = sphi 0, %s148
    %s165 = sphi 0, %s149
  $region4: #{_lambda_.1} parent=0 // loop_header_branch
    %22 = sbr.rel (%p20) target = $region8
  $region5: #{_lambda_.1} parent=0 // loop_body
    %s24 = ssub.s32 %s19, 1
    %s25 = ssub.s32 %s19, 2
    %s32 = sadd.s32 1, %s27
    %p33 = scmp.ge.s32.totalorder %s32, 5
    %s34 = scalar_select %p33, 0, %s32
    %s35 = sadd.s32 1, %s26
    %s36 = scalar_select %p33, %s35, %s26
    %p37 = scmp.ge.s32.totalorder %s36, 1
    %s38 = scalar_select %p37, 0, %s36
    %s39 = ssub.s32 %s26, %s38
    %p40 = scmp.eq.s32.totalorder %s39, 0
    %s42 = sadd.s32 %s41, 1
    %s43 = scalar_select %p40, %s41, %s42
    %p46 = pneg %p40
    %p47 = scmp.eq.s32.totalorder %s19, 4
    %p48 = por %p46, %p47
    %p49 = scmp.ne.s32.totalorder %s41, %s44
    %p50 = scmp.eq.s32.totalorder %s19, 0
    %p51 = por %p49, %p50
    %p52 = scmp.ne.s32.totalorder %s41, %s44
    %p53 = scmp.eq.s32.totalorder %s24, 4
    %p54 = por %p52, %p53
    %p55 = scmp.ne.s32.totalorder %s44, %s45
    %p56 = scmp.eq.s32.totalorder %s24, 0
    %p57 = por %p55, %p56
    %p58 = scmp.ne.s32.totalorder %s44, %s45
    %p59 = scmp.eq.s32.totalorder %s25, 4
    %p60 = por %p58, %p59
    %p62 = scmp.ne.s32.totalorder %s45, %s61
    %p63 = scmp.eq.s32.totalorder %s25, 0
    %p64 = por %p62, %p63
    %s65 = ssub.s32 %s26, %s38
    %p66 = scmp.eq.s32.totalorder %s65, 0
    %s68 = sadd.s32 %s67, 1
    %s69 = scalar_select %p66, %s67, %s68
    %p72 = pneg %p66
    %p73 = scmp.eq.s32.totalorder %s19, 4
    %p74 = por %p72, %p73
    %p75 = scmp.ne.s32.totalorder %s67, %s70
    %p76 = scmp.eq.s32.totalorder %s19, 0
    %p77 = por %p75, %p76
    %p78 = scmp.ne.s32.totalorder %s67, %s70
    %p79 = scmp.eq.s32.totalorder %s24, 4
    %p80 = por %p78, %p79
    %p81 = scmp.ne.s32.totalorder %s70, %s71
    %p82 = scmp.eq.s32.totalorder %s24, 0
    %p83 = por %p81, %p82
    %p84 = scmp.ne.s32.totalorder %s70, %s71
    %p85 = scmp.eq.s32.totalorder %s25, 4
    %p86 = por %p84, %p85
    %p88 = scmp.ne.s32.totalorder %s71, %s87
    %p89 = scmp.eq.s32.totalorder %s25, 0
    %p90 = por %p88, %p89
    %s91 = ssub.s32 %s27, %s34
    %p92 = scmp.eq.s32.totalorder %s91, 0
    %s94 = sadd.s32 %s93, 1
    %s95 = scalar_select %p92, %s93, %s94
    %p98 = pneg %p92
    %p99 = scmp.eq.s32.totalorder %s19, 4
    %p100 = por %p98, %p99
    %p101 = scmp.ne.s32.totalorder %s93, %s96
    %p102 = scmp.eq.s32.totalorder %s19, 0
    %p103 = por %p101, %p102
    %p104 = scmp.ne.s32.totalorder %s93, %s96
    %p105 = scmp.eq.s32.totalorder %s24, 4
    %p106 = por %p104, %p105
    %p107 = scmp.ne.s32.totalorder %s96, %s97
    %p108 = scmp.eq.s32.totalorder %s24, 0
    %p109 = por %p107, %p108
    %p110 = scmp.ne.s32.totalorder %s96, %s97
    %p111 = scmp.eq.s32.totalorder %s25, 4
    %p112 = por %p110, %p111
    %p114 = scmp.ne.s32.totalorder %s97, %s113
    %p115 = scmp.eq.s32.totalorder %s25, 0
    %p116 = por %p114, %p115
    %s117 = ssub.s32 %s27, %s34
    %p118 = scmp.eq.s32.totalorder %s117, 0
    %s120 = sadd.s32 %s119, 1
    %s121 = scalar_select %p118, %s119, %s120
    %p124 = pneg %p118
    %p125 = scmp.eq.s32.totalorder %s19, 4
    %p126 = por %p124, %p125
    %p127 = scmp.ne.s32.totalorder %s119, %s122
    %p128 = scmp.eq.s32.totalorder %s19, 0
    %p129 = por %p127, %p128
    %p130 = scmp.ne.s32.totalorder %s119, %s122
    %p131 = scmp.eq.s32.totalorder %s24, 4
    %p132 = por %p130, %p131
    %p133 = scmp.ne.s32.totalorder %s122, %s123
    %p134 = scmp.eq.s32.totalorder %s24, 0
    %p135 = por %p133, %p134
    %p136 = scmp.ne.s32.totalorder %s122, %s123
    %p137 = scmp.eq.s32.totalorder %s25, 4
    %p138 = por %p136, %p137
    %p140 = scmp.ne.s32.totalorder %s123, %s139
    %p141 = scmp.eq.s32.totalorder %s25, 0
    %p142 = por %p140, %p141
    %s143 = ssub.s32 %s26, %s38
    %p144 = scmp.eq.s32.totalorder %s143, 0
    %s146 = sadd.s32 %s145, 1
    %s147 = scalar_select %p144, %s145, %s146
    %p150 = pneg %p144
    %p151 = scmp.eq.s32.totalorder %s19, 4
    %p152 = por %p150, %p151
    %p153 = scmp.ne.s32.totalorder %s145, %s148
    %p154 = scmp.eq.s32.totalorder %s19, 0
    %p155 = por %p153, %p154
    %p156 = scmp.ne.s32.totalorder %s145, %s148
    %p157 = scmp.eq.s32.totalorder %s24, 4
    %p158 = por %p156, %p157
    %p159 = scmp.ne.s32.totalorder %s148, %s149
    %p160 = scmp.eq.s32.totalorder %s24, 0
    %p161 = por %p159, %p160
    %p162 = scmp.ne.s32.totalorder %s148, %s149
    %p163 = scmp.eq.s32.totalorder %s25, 4
    %p164 = por %p162, %p163
    %p166 = scmp.ne.s32.totalorder %s149, %s165
    %p167 = scmp.eq.s32.totalorder %s25, 0
    %p168 = por %p166, %p167
    %p169 = scmp.le.s32.totalorder 1, %s19
    %p170 = scmp.lt.s32.totalorder %s19, 6
    %p171 = pnand %p169, %p170
    %p172 = pneg %p171
    // Predicated region
    $region9: #{_lambda_.1} parent=5 // pred_check
      _
    $region10: #{_lambda_.1} parent=5 // pred_check_branch
      %174 = sbr.rel (%p171) target = $region12
    $region11: #{_lambda_.1} parent=5 // pred_region
      %s175 = ssub.s32 %s19, 1
      // Predicated region
      $region13: #{_lambda_.1} parent=11 // pred_check
        %p176 = pneg %p57
      $region14: #{_lambda_.1} parent=11 // pred_check_branch
        %178 = sbr.rel (%p176) target = $region16
      $region15: #{_lambda_.1} parent=11 // pred_region
        %s179 = smul.u32 2, %s28
        %p180 = scmp.lt.s32.totalorder %s179, 1
        %s181 = scalar_select %p180, %s179, 1
        %s182 = smul.addr %s181, 4
        %s183 = scalar_lea.vmem %s1, %s182
        %s184 = smul.u32 2, %s28
      $region16: #{_lambda_.1} parent=11 // pred_fallthru
        _
      // Predicated region
      $region17: #{_lambda_.1} parent=11 // pred_check
        %p185 = pneg %p83
      $region18: #{_lambda_.1} parent=11 // pred_check_branch
        %187 = sbr.rel (%p185) target = $region20
      $region19: #{_lambda_.1} parent=11 // pred_region
        %s188 = smul.u32 2, %s28
        %p189 = scmp.lt.s32.totalorder %s188, 1
        %s190 = scalar_select %p189, %s188, 1
        %s191 = smul.addr %s190, 8
        %s192 = scalar_lea.vmem %s2, %s191
        %s193 = smul.u32 2, %s28
      $region20: #{_lambda_.1} parent=11 // pred_fallthru
        _
    $region12: #{_lambda_.1} parent=5 // pred_fallthru
      _
    %p194 = scmp.lt.s32.totalorder %s19, 5
    // Predicated region
    $region21: #{_lambda_.1} parent=5 // pred_check
      %p195 = pneg %p194
    $region22: #{_lambda_.1} parent=5 // pred_check_branch
      %197 = sbr.rel (%p195) target = $region24
    $region23: #{_lambda_.1} parent=5 // pred_region
      // Predicated region
      $region25: #{_lambda_.1} parent=23 // pred_check
        %p198 = pneg %p103
      $region26: #{_lambda_.1} parent=23 // pred_check_branch
        %200 = sbr.rel (%p198) target = $region28
      $region27: #{_lambda_.1} parent=23 // pred_region
        %p201 = scmp.lt.s32.totalorder %s27, 4
        %s202 = scalar_select %p201, %s27, 4
        %s203 = smul.addr %s202, 32
        %s204 = smul.addr %s203, 4
        %s205 = scalar_lea.vmem %s3, %s204
      $region28: #{_lambda_.1} parent=23 // pred_fallthru
        _
      // Predicated region
      $region29: #{_lambda_.1} parent=23 // pred_check
        %p206 = pneg %p129
      $region30: #{_lambda_.1} parent=23 // pred_check_branch
        %208 = sbr.rel (%p206) target = $region32
      $region31: #{_lambda_.1} parent=23 // pred_region
        %p209 = scmp.lt.s32.totalorder %s27, 4
        %s210 = scalar_select %p209, %s27, 4
        %s211 = smul.addr %s210, 16
        %s212 = smul.addr %s211, 4
        %s213 = scalar_lea.vmem %s4, %s212
      $region32: #{_lambda_.1} parent=23 // pred_fallthru
        _
    $region24: #{_lambda_.1} parent=5 // pred_fallthru
      _
    %p214 = scmp.le.s32.totalorder 1, %s19
    %p215 = scmp.lt.s32.totalorder %s19, 6
    %p216 = pnand %p214, %p215
    %p217 = pneg %p216
    // Predicated region
    $region33: #{_lambda_.1} parent=5 // pred_check
      _
    $region34: #{_lambda_.1} parent=5 // pred_check_branch
      %219 = sbr.rel (%p216) target = $region36
    $region35: #{_lambda_.1} parent=5 // pred_region
      %s220 = ssub.s32 %s19, 1
      %s221 = smul.u32 2, %s28
      %p222 = scmp.lt.s32.totalorder %s221, 1
      %s223 = scalar_select %p222, %s221, 1
      %s224 = smul.addr %s223, 4
      %s225 = scalar_lea.vmem %s1, %s224
      %p226 = pneg %p57
      %p227 = pneg %p54
      %s228 = smul.u32 2, %s28
      %p229 = scmp.lt.s32.totalorder %s228, 1
      %s230 = scalar_select %p229, %s228, 1
      %s231 = smul.addr %s230, 8
      %s232 = scalar_lea.vmem %s2, %s231
      %p233 = pneg %p83
      %p234 = pneg %p80
      %p235 = scmp.lt.s32.totalorder %s29, 4
      %s236 = scalar_select %p235, %s29, 4
      %s237 = smul.addr %s236, 32
      %s238 = smul.addr %s237, 4
      %s239 = scalar_lea.vmem %s3, %s238
      %p240 = pneg %p109
      %p241 = pneg %p106
      %p242 = scmp.lt.s32.totalorder %s29, 4
      %s243 = scalar_select %p242, %s29, 4
      %s244 = smul.addr %s243, 16
      %s245 = smul.addr %s244, 4
      %s246 = scalar_lea.vmem %s4, %s245
      %p247 = pneg %p135
      %p248 = pneg %p132
      %p249 = pneg %p161
      %p250 = pneg %p158
      %s251 = smul.u32 2, %s28
      %p252 = scmp.lt.s32.totalorder %s251, 1
      %s253 = scalar_select %p252, %s251, 1
      %s254 = smul.addr %s253, 8
      %s255 = scalar_lea.vmem %s5, %s254
      %s256 = smul.u32 2, %s28
      %p257 = scmp.lt.s32.totalorder %s256, 1
      %s258 = scalar_select %p257, %s256, 1
      %s259 = smul.addr %s258, 4
      %s260 = scalar_lea.vmem %s1, %s259
      %s261 = smul.u32 2, %s28
      %s262 = smul.u32 2, %s28
      %p263 = scmp.lt.s32.totalorder %s262, 1
      %s264 = scalar_select %p263, %s262, 1
      %s265 = smul.addr %s264, 8
      %s266 = scalar_lea.vmem %s2, %s265
      %s267 = smul.u32 2, %s28
      %p268 = scmp.lt.s32.totalorder %s29, 4
      %s269 = scalar_select %p268, %s29, 4
      %s270 = smul.addr %s269, 32
      %s271 = smul.addr %s270, 4
      %s272 = scalar_lea.vmem %s3, %s271
      %p273 = scmp.lt.s32.totalorder %s29, 4
      %s274 = scalar_select %p273, %s29, 4
      %s275 = smul.addr %s274, 16
      %s276 = smul.addr %s275, 4
      %s277 = scalar_lea.vmem %s4, %s276
      %s278 = smul.u32 2, %s28
      %p279 = scmp.lt.s32.totalorder %s278, 1
      %s280 = scalar_select %p279, %s278, 1
      %s281 = smul.addr %s280, 8
      %s282 = scalar_lea.vmem %s5, %s281
      %s283 = smul.u32 2, %s28
      %p284 = scmp.eq.s32.totalorder %s29, 0
      // Predicated region
      $region37: #{_lambda_.1} parent=35 // pred_check
        %p285 = pneg %p284
      $region38: #{_lambda_.1} parent=35 // pred_check_branch
        %287 = sbr.rel (%p285) target = $region40
      $region39: #{_lambda_.1} parent=35 // pred_region
        %288 = vst [vmem:[%s282] sm:$0xff] 0.0
        %289 = vst [vmem:[%s282 + $0x8] sm:$0xff] 0.0
      $region40: #{_lambda_.1} parent=35 // pred_fallthru
        _
      %s290 = smul.u32 %s28, 5
      %s291 = sadd.s32 %s290, %s29
      %s292 = sld [smem:[#allocation3 + %s291]]
      %p293 = scmp.ne.s32.totalorder %s292, 0
      // Predicated region
      $region41: #{_lambda_.1} parent=35 // pred_check
        %p294 = pneg %p293
      $region42: #{_lambda_.1} parent=35 // pred_check_branch
        %296 = sbr.rel (%p294) target = $region44
      $region43: #{_lambda_.1} parent=35 // pred_region
        %v297 = vld [vmem:[%s260] sm:$0xf]
        %v298 = vld [vmem:[%s260 + $0x4] sm:$0xf]
        %v299 = vld [vmem:[%s272] sm:$0xff]
        %v300 = vld [vmem:[%s272 + $0x8] sm:$0xff]
        %v301 = vld [vmem:[%s272 + $0x10] sm:$0xff]
        %v302 = vld [vmem:[%s272 + $0x18] sm:$0xff]
        %v303 = vld [vmem:[%s272 + $0x20] sm:$0xff]
        %v304 = vld [vmem:[%s272 + $0x28] sm:$0xff]
        %v305 = vld [vmem:[%s272 + $0x30] sm:$0xff]
        %v306 = vld [vmem:[%s272 + $0x38] sm:$0xff]
        %v307 = vld [vmem:[%s272 + $0x40] sm:$0xff]
        %v308 = vld [vmem:[%s272 + $0x48] sm:$0xff]
        %v309 = vld [vmem:[%s272 + $0x50] sm:$0xff]
        %v310 = vld [vmem:[%s272 + $0x58] sm:$0xff]
        %v311 = vld [vmem:[%s272 + $0x60] sm:$0xff]
        %v312 = vld [vmem:[%s272 + $0x68] sm:$0xff]
        %v313 = vld [vmem:[%s272 + $0x70] sm:$0xff]
        %v314 = vld [vmem:[%s272 + $0x78] sm:$0xff]
        %v317 = vunpack.c.l.b16 %v297
        %v318 = vunpack.c.l.b16 %v298
        %v319 = vpack.c.b16 %v318, %v317
        %v337 = vunpack.c.l.b16 %v299
        %v338 = vunpack.c.h.b16 %v299
        %v339 = vunpack.c.l.b16 %v300
        %v340 = vunpack.c.h.b16 %v300
        %v341 = vunpack.c.l.b16 %v301
        %v342 = vunpack.c.h.b16 %v301
        %v343 = vunpack.c.l.b16 %v302
        %v344 = vunpack.c.h.b16 %v302
        %v345 = vunpack.c.l.b16 %v303
        %v346 = vunpack.c.h.b16 %v303
        %v347 = vunpack.c.l.b16 %v304
        %v348 = vunpack.c.h.b16 %v304
        %v349 = vunpack.c.l.b16 %v305
        %v350 = vunpack.c.h.b16 %v305
        %v351 = vunpack.c.l.b16 %v306
        %v352 = vunpack.c.h.b16 %v306
        %v353 = vunpack.c.l.b16 %v307
        %v354 = vunpack.c.h.b16 %v307
        %v355 = vunpack.c.l.b16 %v308
        %v356 = vunpack.c.h.b16 %v308
        %v357 = vunpack.c.l.b16 %v309
        %v358 = vunpack.c.h.b16 %v309
        %v359 = vunpack.c.l.b16 %v310
        %v360 = vunpack.c.h.b16 %v310
        %v361 = vunpack.c.l.b16 %v311
        %v362 = vunpack.c.h.b16 %v311
        %v363 = vunpack.c.l.b16 %v312
        %v364 = vunpack.c.h.b16 %v312
        %v365 = vunpack.c.l.b16 %v313
        %v366 = vunpack.c.h.b16 %v313
        %v367 = vunpack.c.l.b16 %v314
        %v368 = vunpack.c.h.b16 %v314
        %v369 = vpack.c.b16 %v339, %v337
        %v370 = vpack.c.b16 %v340, %v338
        %v371 = vpack.c.b16 %v343, %v341
        %v372 = vpack.c.b16 %v344, %v342
        %v373 = vpack.c.b16 %v347, %v345
        %v374 = vpack.c.b16 %v348, %v346
        %v375 = vpack.c.b16 %v351, %v349
        %v376 = vpack.c.b16 %v352, %v350
        %v377 = vpack.c.b16 %v355, %v353
        %v378 = vpack.c.b16 %v356, %v354
        %v379 = vpack.c.b16 %v359, %v357
        %v380 = vpack.c.b16 %v360, %v358
        %v381 = vpack.c.b16 %v363, %v361
        %v382 = vpack.c.b16 %v364, %v362
        %v383 = vpack.c.b16 %v367, %v365
        %v384 = vpack.c.b16 %v368, %v366
        %401 = vmatpush.bf16.msra.mxu0 %v383
        %402 = vmatpush.bf16.msra.mxu0 %v381
        %403 = vmatpush.bf16.msra.mxu0 %v379
        %404 = vmatpush.bf16.msra.mxu0 %v377
        %405 = vmatpush.bf16.msra.mxu0 %v375
        %406 = vmatpush.bf16.msra.mxu0 %v373
        %407 = vmatpush.bf16.msra.mxu0 %v371
        %408 = vmatpush.bf16.msra.mxu0 %v369
        %409 = vmatmul.bf16.gmra.mxu0 %v319
        %v410 = vpop.f32.mrf.mxu0
        %v411 = vadd.f32 0.0, %v410
        %v412 = vpop.f32.mrf.mxu0
        %v413 = vadd.f32 0.0, %v412
        %414 = vdwg.mxu0
        %415 = vmatpush.bf16.msra.mxu0 %v384
        %416 = vmatpush.bf16.msra.mxu0 %v382
        %417 = vmatpush.bf16.msra.mxu0 %v380
        %418 = vmatpush.bf16.msra.mxu0 %v378
        %419 = vmatpush.bf16.msra.mxu0 %v376
        %420 = vmatpush.bf16.msra.mxu0 %v374
        %421 = vmatpush.bf16.msra.mxu0 %v372
        %422 = vmatpush.bf16.msra.mxu0 %v370
        %423 = vmatmul.bf16.gmra.mxu0 %v319
        %v424 = vpop.f32.mrf.mxu0
        %v425 = vadd.f32 0.0, %v424
        %v426 = vpop.f32.mrf.mxu0
        %v427 = vadd.f32 0.0, %v426
        %428 = vdwg.mxu0
        %v429 = vxor.u32 %v411, 2147483648
        %v430 = vxor.u32 %v413, 2147483648
        %v431 = vmul.f32 %v429, 1.442695
        %v432 = vpow.pop %v431
        %v433 = vmul.f32 %v430, 1.442695
        %v434 = vpow.pop %v433
        %v435 = vadd.f32 %v432, 1.0
        %v436 = vadd.f32 %v434, 1.0
        %v437 = vrcp.pop %v435
        %v438 = vmul.f32 %v435, %v437
        %v439 = vsub.f32 1.0, %v438
        %v440 = vmul.f32 %v437, %v439
        %v441 = vadd.f32 %v437, %v440
        %vm442 = vweird.f32 %v435
        %vm443 = vweird.f32 %v437
        %vm444 = vmor %vm442, %vm443
        %v445 = vsel %vm444, %v437, %v441
        %v446 = vand.u32 2147483647, %v435
        %vm447 = vcmp.eq.f32.partialorder %v446, 8.507059e+37
        %v448 = vand.u32 %v435, 2147483648
        %v449 = vor.u32 1.1754944e-38, %v448
        %v450 = vsel %vm447, %v449, %v445
        %v451 = vmul.f32 1.0, %v450
        %v452 = vrcp.pop %v436
        %v453 = vmul.f32 %v436, %v452
        %v454 = vsub.f32 1.0, %v453
        %v455 = vmul.f32 %v452, %v454
        %v456 = vadd.f32 %v452, %v455
        %vm457 = vweird.f32 %v436
        %vm458 = vweird.f32 %v452
        %vm459 = vmor %vm457, %vm458
        %v460 = vsel %vm459, %v452, %v456
        %v461 = vand.u32 2147483647, %v436
        %vm462 = vcmp.eq.f32.partialorder %v461, 8.507059e+37
        %v463 = vand.u32 %v436, 2147483648
        %v464 = vor.u32 1.1754944e-38, %v463
        %v465 = vsel %vm462, %v464, %v460
        %v466 = vmul.f32 1.0, %v465
        %v467 = vmul.f32 %v411, %v451
        %v468 = vmul.f32 %v413, %v466
        %v469 = vmul.f32 %v467, %v425
        %v470 = vmul.f32 %v468, %v427
        %v471 = vpack.c.bf16 %v470, %v469
        %v472 = vld [vmem:[%s277] sm:$0xf]
        %v473 = vld [vmem:[%s277 + $0x4] sm:$0xf]
        %v474 = vld [vmem:[%s277 + $0x8] sm:$0xf]
        %v475 = vld [vmem:[%s277 + $0xc] sm:$0xf]
        %v476 = vld [vmem:[%s277 + $0x10] sm:$0xf]
        %v477 = vld [vmem:[%s277 + $0x14] sm:$0xf]
        %v478 = vld [vmem:[%s277 + $0x18] sm:$0xf]
        %v479 = vld [vmem:[%s277 + $0x1c] sm:$0xf]
        %v480 = vld [vmem:[%s277 + $0x20] sm:$0xf]
        %v481 = vld [vmem:[%s277 + $0x24] sm:$0xf]
        %v482 = vld [vmem:[%s277 + $0x28] sm:$0xf]
        %v483 = vld [vmem:[%s277 + $0x2c] sm:$0xf]
        %v484 = vld [vmem:[%s277 + $0x30] sm:$0xf]
        %v485 = vld [vmem:[%s277 + $0x34] sm:$0xf]
        %v486 = vld [vmem:[%s277 + $0x38] sm:$0xf]
        %v487 = vld [vmem:[%s277 + $0x3c] sm:$0xf]
        %v504 = vunpack.c.l.b16 %v472
        %v505 = vunpack.c.l.b16 %v473
        %v506 = vunpack.c.l.b16 %v474
        %v507 = vunpack.c.l.b16 %v475
        %v508 = vunpack.c.l.b16 %v476
        %v509 = vunpack.c.l.b16 %v477
        %v510 = vunpack.c.l.b16 %v478
        %v511 = vunpack.c.l.b16 %v479
        %v512 = vunpack.c.l.b16 %v480
        %v513 = vunpack.c.l.b16 %v481
        %v514 = vunpack.c.l.b16 %v482
        %v515 = vunpack.c.l.b16 %v483
        %v516 = vunpack.c.l.b16 %v484
        %v517 = vunpack.c.l.b16 %v485
        %v518 = vunpack.c.l.b16 %v486
        %v519 = vunpack.c.l.b16 %v487
        %v520 = vpack.c.b16 %v505, %v504
        %v521 = vpack.c.b16 %v507, %v506
        %v522 = vpack.c.b16 %v509, %v508
        %v523 = vpack.c.b16 %v511, %v510
        %v524 = vpack.c.b16 %v513, %v512
        %v525 = vpack.c.b16 %v515, %v514
        %v526 = vpack.c.b16 %v517, %v516
        %v527 = vpack.c.b16 %v519, %v518
        %536 = vmatpush.bf16.msra.mxu0 %v527
        %537 = vmatpush.bf16.msra.mxu0 %v526
        %538 = vmatpush.bf16.msra.mxu0 %v525
        %539 = vmatpush.bf16.msra.mxu0 %v524
        %540 = vmatpush.bf16.msra.mxu0 %v523
        %541 = vmatpush.bf16.msra.mxu0 %v522
        %542 = vmatpush.bf16.msra.mxu0 %v521
        %543 = vmatpush.bf16.msra.mxu0 %v520
        %544 = vmatmul.bf16.gmra.mxu0 %v471
        %v545 = vpop.f32.mrf.mxu0
        %v546 = vadd.f32 0.0, %v545
        %v547 = vpop.f32.mrf.mxu0
        %v548 = vadd.f32 0.0, %v547
        %549 = vdwg.mxu0
        %v550 = vlaneseq
        %v551 = vand.u32 %v550, 127
        %v552 = vstv %s29
        %vm553 = vcmp.eq.s32.totalorder %v551, %v552
        %v554 = vld [vmem:[%s266] sm:$0xff]
        %v555 = vld [vmem:[%s266 + $0x8] sm:$0xff]
        %v556 = vsel %vm553, %v554, 0.0
        %v557 = vsel %vm553, %v555, 0.0
        %558 = vadd.xlane.f32.xlu0 %v556
        %v559 = vpop.xlane.xlu0 %558
        %560 = vadd.xlane.f32.xlu0 %v557
        %v561 = vpop.xlane.xlu0 %560
        %v562 = vld [vmem:[%s282] sm:$0xff]
        %v563 = vld [vmem:[%s282 + $0x8] sm:$0xff]
        %v564 = vmul.f32 %v559, %v546
        %v565 = vmul.f32 %v561, %v548
        %v566 = vadd.f32 %v562, %v564
        %v567 = vadd.f32 %v563, %v565
        %568 = vst [vmem:[%s282] sm:$0xff] %v566
        %569 = vst [vmem:[%s282 + $0x8] sm:$0xff] %v567
      $region44: #{_lambda_.1} parent=35 // pred_fallthru
        _
      %s570 = smul.u32 2, %s28
      %p571 = scmp.lt.s32.totalorder %s570, 1
      %s572 = scalar_select %p571, %s570, 1
      %s573 = smul.addr %s572, 8
      %s574 = scalar_lea.vmem %s5, %s573
      // Predicated region
      $region45: #{_lambda_.1} parent=35 // pred_check
        %p575 = pneg %p158
      $region46: #{_lambda_.1} parent=35 // pred_check_branch
        %577 = sbr.rel (%p575) target = $region48
      $region47: #{_lambda_.1} parent=35 // pred_region
        %s578 = smul.u32 2, %s28
      $region48: #{_lambda_.1} parent=35 // pred_fallthru
        _
      // Predicated region
      $region49: #{_lambda_.1} parent=35 // pred_check
        %p579 = pneg %p158
      $region50: #{_lambda_.1} parent=35 // pred_check_branch
        %581 = sbr.rel (%p579) target = $region52
      $region51: #{_lambda_.1} parent=35 // pred_region
        %s582 = smul.u32 2, %s28
        %p583 = scmp.lt.s32.totalorder %s582, 1
        %s584 = scalar_select %p583, %s582, 1
        %s585 = smul.addr %s584, 8
        %s586 = scalar_lea.vmem %s5, %s585
      $region52: #{_lambda_.1} parent=35 // pred_fallthru
        _
    $region36: #{_lambda_.1} parent=5 // pred_fallthru
      _
    %p587 = scmp.le.s32.totalorder 2, %s19
    // Predicated region
    $region53: #{_lambda_.1} parent=5 // pred_check
      %p588 = pneg %p587
    $region54: #{_lambda_.1} parent=5 // pred_check_branch
      %590 = sbr.rel (%p588) target = $region56
    $region55: #{_lambda_.1} parent=5 // pred_region
      %s591 = ssub.s32 %s19, 2
    $region56: #{_lambda_.1} parent=5 // pred_fallthru
      _
  $region6: #{_lambda_.1} parent=0 // loop_footer
    %s23 = sadd.s32 1, %s19
  $region7: #{_lambda_.1} parent=0 // loop_footer_branch
    %18 = sbr.rel target = $region3
  $region8: #{_lambda_.1} parent=0 // loop_exit
    _

</llo_original>
